<compile_context>
chip_gen: v5e
topology: v5e:2x2
jax: 0.10.0
libtpu: 0.0.40
codegen_flags: <defaults>
</compile_context>

<pallas_src>
import functools

import jax
import jax.numpy as jnp
from jax.experimental import pallas as pl
from jax.experimental.pallas import tpu as pltpu


def captcha_kernel(patches_ref, wbig_ref, bbig_ref, wfc_ref, bfc_ref, out_ref):
    """Fused conv(as matmul) -> bias -> relu -> maxpool(parity max) -> fc."""
    wbig = wbig_ref[...]          # (225, F*25)
    bbig = bbig_ref[...]          # (1,   F*25)

    pooled = None
    for par in range(4):          # 4 pooling parities (a, c)
        h = jnp.dot(patches_ref[par], wbig,
                    preferred_element_type=jnp.float32) + bbig   # (TB, F*25)
        h = jnp.maximum(h, 0.0)                                  # relu
        pooled = h if pooled is None else jnp.maximum(pooled, h)  # 2x2 maxpool

    # Single fused FC matmul on the MXU (dropout = identity at inference).
    out_ref[...] = (jnp.dot(pooled, wfc_ref[...],
                            preferred_element_type=jnp.float32)
                    + bfc_ref[...])


def prepare_params(conv_w, conv_b, fc_w, fc_b):
    """Constant weight re-layouts, done ONCE at model load (not per call)."""
    F = conv_w.shape[0]
    w = conv_w.reshape(F, 9).astype(jnp.float32)                  # [f, tap]
    eye25 = jnp.eye(25, dtype=jnp.float32)
    # Wbig[p*9 + tap, f*25 + p2] = w[f, tap] * (p == p2)
    wbig = (eye25[:, None, None, :] * w.T[None, :, :, None]).reshape(225, F * 25)
    bbig = jnp.repeat(conv_b.astype(jnp.float32), 25).reshape(1, F * 25)
    wfc_t = fc_w.T.astype(jnp.float32)                            # (F*25, 36)
    bfc = fc_b.astype(jnp.float32).reshape(1, 36)
    return wbig, bbig, wfc_t, bfc


@jax.jit
def captcha_cnn_forward(x, wbig, bbig, wfc_t, bfc):
    """x: (B, 1, 10, 10) NCHW float32. Returns (B, 36) float32."""
    B = x.shape[0]
    F25 = wfc_t.shape[0]

    # --- x-dependent glue (fused by XLA under this jit): pad + parity im2col ---
    xp = jnp.pad(x[:, 0].astype(jnp.float32), ((0, 0), (1, 1), (1, 1)))  # (B,12,12)
    views = []
    for a in (0, 1):
        for c in (0, 1):
            taps = [xp[:, a + di:a + di + 9:2, c + dj:c + dj + 9:2]     # (B,5,5)
                    for di in range(3) for dj in range(3)]
            # column order = (i*5+j)*9 + tap, matching Wbig rows
            views.append(jnp.stack(taps, axis=-1).reshape(B, 225))
    patches = jnp.stack(views, axis=0)                                   # (4,B,225)

    # Batch tiling: whole batch in one block for small B; multiples of 128
    # otherwise (parallel grid -> megacore sharding on v7x).
    TB = B if B <= 128 else 128
    grid = (pl.cdiv(B, TB),)

    return pl.pallas_call(
        captcha_kernel,
        out_shape=jax.ShapeDtypeStruct((B, 36), jnp.float32),
        grid=grid,
        in_specs=[
            pl.BlockSpec((4, TB, 225), lambda i: (0, i, 0)),   # patches
            pl.BlockSpec((225, F25), lambda i: (0, 0)),        # Wbig
            pl.BlockSpec((1, F25), lambda i: (0, 0)),          # conv bias (repeated)
            pl.BlockSpec((F25, 36), lambda i: (0, 0)),         # fc weight (T)
            pl.BlockSpec((1, 36), lambda i: (0, 0)),           # fc bias
        ],
        out_specs=pl.BlockSpec((TB, 36), lambda i: (i, 0)),
        compiler_params=pltpu.CompilerParams(
            dimension_semantics=("parallel",)),
    )(patches, wbig, bbig, wfc_t, bfc)


def reference_forward(x, conv_w, conv_b, fc_w, fc_b):
    """Pure-JAX reference matching PyTorch eval-mode forward."""
    y = jax.lax.conv_general_dilated(
        x, conv_w, window_strides=(1, 1), padding=((1, 1), (1, 1)),
        dimension_numbers=('NCHW', 'OIHW', 'NCHW'),
        precision=jax.lax.Precision.HIGHEST)
    y = y + conv_b[None, :, None, None]
    y = jnp.maximum(y, 0.0)
    y = jax.lax.reduce_window(y, -jnp.inf, jax.lax.max,
                              (1, 1, 2, 2), (1, 1, 2, 2), 'VALID')
    y = y.reshape(y.shape[0], -1)  # (B, F*5*5); dropout = identity in eval
    return jnp.dot(y, fc_w.T, precision=jax.lax.Precision.HIGHEST) + fc_b


if __name__ == "__main__":
    # Spatial must be 10x10 so the pooled map is 5x5 (fc1 expects F*5*5 feats).
    B = 2
    NUM_FILTERS = 8

    key = jax.random.PRNGKey(0)
    k1, k2, k3, k4, k5 = jax.random.split(key, 5)
    x = jax.random.normal(k1, (B, 1, 10, 10), jnp.float32)
    conv_w = jax.random.normal(k2, (NUM_FILTERS, 1, 3, 3), jnp.float32) * 0.1
    conv_b = jax.random.normal(k3, (NUM_FILTERS,), jnp.float32) * 0.1
    fc_w = jax.random.normal(k4, (36, NUM_FILTERS * 5 * 5), jnp.float32) * 0.05
    fc_b = jax.random.normal(k5, (36,), jnp.float32) * 0.05

    # Constant weight re-layouts happen once, outside the per-call hot path.
    wbig, bbig, wfc_t, bfc = prepare_params(conv_w, conv_b, fc_w, fc_b)

    out = captcha_cnn_forward(x, wbig, bbig, wfc_t, bfc)
    out = jax.block_until_ready(out)

    ref = reference_forward(x, conv_w, conv_b, fc_w, fc_b)
    assert out.shape == (B, 36), out.shape
    if not jnp.allclose(out, ref, atol=2e-3, rtol=2e-3):
        raise AssertionError(
            f"mismatch: max abs err = {float(jnp.max(jnp.abs(out - ref)))}")
    print("KERNEL_OK")
</pallas_src>

<mosaic_0001>
module attributes {stable_mosaic.version = 11 : i64} {
  func.func @captcha_kernel(%arg0: i32, %arg1: memref<4x2x225xf32, #tpu.memory_space<vmem>>, %arg2: memref<225x200xf32, #tpu.memory_space<vmem>>, %arg3: memref<1x200xf32, #tpu.memory_space<vmem>>, %arg4: memref<200x36xf32, #tpu.memory_space<vmem>>, %arg5: memref<1x36xf32, #tpu.memory_space<vmem>>, %arg6: memref<2x36xf32, #tpu.memory_space<vmem>>) attributes {dimension_semantics = [#tpu.dimension_semantics<parallel>], iteration_bounds = array<i64: 1>, scalar_prefetch = 0 : i64, scratch_operands = 0 : i64, tpu.core_type = #tpu.core_type<tc>, window_params = [{transform_indices = @transform_0, window_bounds = array<i64: 4, 2, 225>}, {pipeline_mode = #tpu.pipeline_mode<synchronous>, transform_indices = @transform_1, window_bounds = array<i64: 225, 200>}, {pipeline_mode = #tpu.pipeline_mode<synchronous>, transform_indices = @transform_2, window_bounds = array<i64: 1, 200>}, {pipeline_mode = #tpu.pipeline_mode<synchronous>, transform_indices = @transform_3, window_bounds = array<i64: 200, 36>}, {pipeline_mode = #tpu.pipeline_mode<synchronous>, transform_indices = @transform_4, window_bounds = array<i64: 1, 36>}, {transform_indices = @transform_5, window_bounds = array<i64: 2, 36>}]} {
    %c0 = arith.constant 0 : index
    %c0_0 = arith.constant 0 : index
    %0 = vector.load %arg2[%c0, %c0_0] : memref<225x200xf32, #tpu.memory_space<vmem>>, vector<225x200xf32>
    %c0_1 = arith.constant 0 : index
    %c0_2 = arith.constant 0 : index
    %1 = vector.load %arg3[%c0_1, %c0_2] : memref<1x200xf32, #tpu.memory_space<vmem>>, vector<1x200xf32>
    %c0_3 = arith.constant 0 : index
    %c0_4 = arith.constant 0 : index
    %c0_5 = arith.constant 0 : index
    %2 = vector.load %arg1[%c0_3, %c0_4, %c0_5] : memref<4x2x225xf32, #tpu.memory_space<vmem>>, vector<1x2x225xf32>
    %3 = vector.shape_cast %2 : vector<1x2x225xf32> to vector<2x225xf32>
    %cst = arith.constant dense<0.000000e+00> : vector<2x200xf32>
    %4 = tpu.matmul %3, %0, %cst {dimension_numbers = #tpu.dot_dimension_numbers<[1], [0], [0], [1], [0, 0, 1, 1], [], []>} : vector<2x225xf32>, vector<225x200xf32>, vector<2x200xf32> -> vector<2x200xf32>
    %5 = vector.broadcast %1 : vector<1x200xf32> to vector<2x200xf32>
    %6 = arith.addf %4, %5 : vector<2x200xf32>
    %cst_6 = arith.constant 0.000000e+00 : f32
    %7 = vector.broadcast %cst_6 : f32 to vector<2x200xf32>
    %8 = arith.maximumf %6, %7 : vector<2x200xf32>
    %c1 = arith.constant 1 : index
    %c0_7 = arith.constant 0 : index
    %c0_8 = arith.constant 0 : index
    %9 = vector.load %arg1[%c1, %c0_7, %c0_8] : memref<4x2x225xf32, #tpu.memory_space<vmem>>, vector<1x2x225xf32>
    %10 = vector.shape_cast %9 : vector<1x2x225xf32> to vector<2x225xf32>
    %cst_9 = arith.constant dense<0.000000e+00> : vector<2x200xf32>
    %11 = tpu.matmul %10, %0, %cst_9 {dimension_numbers = #tpu.dot_dimension_numbers<[1], [0], [0], [1], [0, 0, 1, 1], [], []>} : vector<2x225xf32>, vector<225x200xf32>, vector<2x200xf32> -> vector<2x200xf32>
    %12 = vector.broadcast %1 : vector<1x200xf32> to vector<2x200xf32>
    %13 = arith.addf %11, %12 : vector<2x200xf32>
    %cst_10 = arith.constant 0.000000e+00 : f32
    %14 = vector.broadcast %cst_10 : f32 to vector<2x200xf32>
    %15 = arith.maximumf %13, %14 : vector<2x200xf32>
    %16 = arith.maximumf %8, %15 : vector<2x200xf32>
    %c2 = arith.constant 2 : index
    %c0_11 = arith.constant 0 : index
    %c0_12 = arith.constant 0 : index
    %17 = vector.load %arg1[%c2, %c0_11, %c0_12] : memref<4x2x225xf32, #tpu.memory_space<vmem>>, vector<1x2x225xf32>
    %18 = vector.shape_cast %17 : vector<1x2x225xf32> to vector<2x225xf32>
    %cst_13 = arith.constant dense<0.000000e+00> : vector<2x200xf32>
    %19 = tpu.matmul %18, %0, %cst_13 {dimension_numbers = #tpu.dot_dimension_numbers<[1], [0], [0], [1], [0, 0, 1, 1], [], []>} : vector<2x225xf32>, vector<225x200xf32>, vector<2x200xf32> -> vector<2x200xf32>
    %20 = vector.broadcast %1 : vector<1x200xf32> to vector<2x200xf32>
    %21 = arith.addf %19, %20 : vector<2x200xf32>
    %cst_14 = arith.constant 0.000000e+00 : f32
    %22 = vector.broadcast %cst_14 : f32 to vector<2x200xf32>
    %23 = arith.maximumf %21, %22 : vector<2x200xf32>
    %24 = arith.maximumf %16, %23 : vector<2x200xf32>
    %c3 = arith.constant 3 : index
    %c0_15 = arith.constant 0 : index
    %c0_16 = arith.constant 0 : index
    %25 = vector.load %arg1[%c3, %c0_15, %c0_16] : memref<4x2x225xf32, #tpu.memory_space<vmem>>, vector<1x2x225xf32>
    %26 = vector.shape_cast %25 : vector<1x2x225xf32> to vector<2x225xf32>
    %cst_17 = arith.constant dense<0.000000e+00> : vector<2x200xf32>
    %27 = tpu.matmul %26, %0, %cst_17 {dimension_numbers = #tpu.dot_dimension_numbers<[1], [0], [0], [1], [0, 0, 1, 1], [], []>} : vector<2x225xf32>, vector<225x200xf32>, vector<2x200xf32> -> vector<2x200xf32>
    %28 = vector.broadcast %1 : vector<1x200xf32> to vector<2x200xf32>
    %29 = arith.addf %27, %28 : vector<2x200xf32>
    %cst_18 = arith.constant 0.000000e+00 : f32
    %30 = vector.broadcast %cst_18 : f32 to vector<2x200xf32>
    %31 = arith.maximumf %29, %30 : vector<2x200xf32>
    %32 = arith.maximumf %24, %31 : vector<2x200xf32>
    %c0_19 = arith.constant 0 : index
    %c0_20 = arith.constant 0 : index
    %33 = vector.load %arg4[%c0_19, %c0_20] : memref<200x36xf32, #tpu.memory_space<vmem>>, vector<200x36xf32>
    %cst_21 = arith.constant dense<0.000000e+00> : vector<2x36xf32>
    %34 = tpu.matmul %32, %33, %cst_21 {dimension_numbers = #tpu.dot_dimension_numbers<[1], [0], [0], [1], [0, 0, 1, 1], [], []>} : vector<2x200xf32>, vector<200x36xf32>, vector<2x36xf32> -> vector<2x36xf32>
    %c0_22 = arith.constant 0 : index
    %c0_23 = arith.constant 0 : index
    %35 = vector.load %arg5[%c0_22, %c0_23] : memref<1x36xf32, #tpu.memory_space<vmem>>, vector<1x36xf32>
    %36 = vector.broadcast %35 : vector<1x36xf32> to vector<2x36xf32>
    %37 = arith.addf %34, %36 : vector<2x36xf32>
    %c0_24 = arith.constant 0 : index
    %c0_25 = arith.constant 0 : index
    %38 = vector.load %arg6[%c0_24, %c0_25] : memref<2x36xf32, #tpu.memory_space<vmem>>, vector<2x36xf32>
    tpu.vector_store %arg6[%c0_24, %c0_25], %37 {strides = array<i32>} : memref<2x36xf32, #tpu.memory_space<vmem>>, vector<2x36xf32>,
    return
  }
  func.func @transform_0(%arg0: i32) -> (i32, i32, i32) {
    %c0_i32 = arith.constant 0 : i32
    %c0_i32_0 = arith.constant 0 : i32
    %c0_i32_1 = arith.constant 0 : i32
    return %c0_i32, %arg0, %c0_i32_0 : i32, i32, i32
  }
  func.func @transform_1(%arg0: i32) -> (i32, i32) {
    %c0_i32 = arith.constant 0 : i32
    %c0_i32_0 = arith.constant 0 : i32
    %c0_i32_1 = arith.constant 0 : i32
    return %c0_i32, %c0_i32_0 : i32, i32
  }
  func.func @transform_2(%arg0: i32) -> (i32, i32) {
    %c0_i32 = arith.constant 0 : i32
    %c0_i32_0 = arith.constant 0 : i32
    %c0_i32_1 = arith.constant 0 : i32
    return %c0_i32, %c0_i32_0 : i32, i32
  }
  func.func @transform_3(%arg0: i32) -> (i32, i32) {
    %c0_i32 = arith.constant 0 : i32
    %c0_i32_0 = arith.constant 0 : i32
    %c0_i32_1 = arith.constant 0 : i32
    return %c0_i32, %c0_i32_0 : i32, i32
  }
  func.func @transform_4(%arg0: i32) -> (i32, i32) {
    %c0_i32 = arith.constant 0 : i32
    %c0_i32_0 = arith.constant 0 : i32
    %c0_i32_1 = arith.constant 0 : i32
    return %c0_i32, %c0_i32_0 : i32, i32
  }
  func.func @transform_5(%arg0: i32) -> (i32, i32) {
    %c0_i32 = arith.constant 0 : i32
    %c0_i32_0 = arith.constant 0 : i32
    return %arg0, %c0_i32 : i32, i32
  }
}

</mosaic_0001>

<llo_original>
// kernel: captcha_cnn_forward.1
$region0: #{captcha_cnn_forward.1}
  #allocation0 [shape = 'u32[]', space=smem, size = 0x4, offset = 0x4, fixed_abs, tag = 'smem constant byte address 0x4 - core index']
  #allocation1 [shape = 'u32[72,128]{1,0:T(1,128)}', space=vmem, size = 0x9000, scoped, tag = 'internal scratch']
  %s0 = inlined_call_operand.vmem [shape: f32[4,2,225], index: 0, kind: input, shape index: {}]
  %s1 = inlined_call_operand.vmem [shape: f32[225,200], index: 1, kind: input, shape index: {}]
  %s2 = inlined_call_operand.vmem [shape: f32[1,200], index: 2, kind: input, shape index: {}]
  %s3 = inlined_call_operand.vmem [shape: f32[200,36], index: 3, kind: input, shape index: {}]
  %s4 = inlined_call_operand.vmem [shape: f32[1,36], index: 4, kind: input, shape index: {}]
  %s5 = inlined_call_operand.hbm [shape: f32[2,36], index: 5, kind: output, shape index: {}]
  %s6 = sld [smem:[#allocation0]]
  $region30: #{captcha_cnn_forward.1} parent=0
    _
  %s8 = ssub.s32 1, %s6
  %s9 = scalar_select 0, %s8, %s6
  $region1: #{captcha_cnn_forward.1} parent=0
    #allocation2 [shape = 'u8[1024]{0}', space=vmem, size = 0x400, scoped, tag = 'output window, operand 0, single buffered']
    #allocation3 [shape = 's32[1]{0}', space=sflag, size = 0x4, scoped, tag = 'scoped memory for captcha_cnn_forward.1']
    %10 = vsyncpa [#allocation3], 0
    // Predicated region
    $region2: #{captcha_cnn_forward.1} parent=1 // pred_check
      _
    $region3: #{captcha_cnn_forward.1} parent=1 // pred_check_branch
      %12 = sbr.rel (0) target = $region5
    $region4: #{captcha_cnn_forward.1} parent=1 // pred_region
      _
    $region5: #{captcha_cnn_forward.1} parent=1 // pred_fallthru
      _
    // Predicated region
    $region6: #{captcha_cnn_forward.1} parent=1 // pred_check
      _
    $region7: #{captcha_cnn_forward.1} parent=1 // pred_check_branch
      %14 = sbr.rel (0) target = $region9
    $region8: #{captcha_cnn_forward.1} parent=1 // pred_region
      _
    $region9: #{captcha_cnn_forward.1} parent=1 // pred_fallthru
      _
    // Predicated region
    $region10: #{captcha_cnn_forward.1} parent=1 // pred_check
      _
    $region11: #{captcha_cnn_forward.1} parent=1 // pred_check_branch
      %16 = sbr.rel (0) target = $region13
    $region12: #{captcha_cnn_forward.1} parent=1 // pred_region
      _
    $region13: #{captcha_cnn_forward.1} parent=1 // pred_fallthru
      _
    // Predicated region
    $region14: #{captcha_cnn_forward.1} parent=1 // pred_check
      _
    $region15: #{captcha_cnn_forward.1} parent=1 // pred_check_branch
      %18 = sbr.rel (0) target = $region17
    $region16: #{captcha_cnn_forward.1} parent=1 // pred_region
      _
    $region17: #{captcha_cnn_forward.1} parent=1 // pred_fallthru
      _
    // Predicated region
    $region18: #{captcha_cnn_forward.1} parent=1 // pred_check
      _
    $region19: #{captcha_cnn_forward.1} parent=1 // pred_check_branch
      %20 = sbr.rel (0) target = $region21
    $region20: #{captcha_cnn_forward.1} parent=1 // pred_region
      _
    $region21: #{captcha_cnn_forward.1} parent=1 // pred_fallthru
      _
    %v21 = vld [vmem:[%s1] sm:$0xff]
    %v22 = vld [vmem:[%s1 + $0x8] sm:$0xff]
    %v23 = vld [vmem:[%s1 + $0x10] sm:$0xff]
    %v24 = vld [vmem:[%s1 + $0x18] sm:$0xff]
    %v25 = vld [vmem:[%s1 + $0x20] sm:$0xff]
    %v26 = vld [vmem:[%s1 + $0x28] sm:$0xff]
    %v27 = vld [vmem:[%s1 + $0x30] sm:$0xff]
    %v28 = vld [vmem:[%s1 + $0x38] sm:$0xff]
    %v29 = vld [vmem:[%s1 + $0x40] sm:$0xff]
    %v30 = vld [vmem:[%s1 + $0x48] sm:$0xff]
    %v31 = vld [vmem:[%s1 + $0x50] sm:$0xff]
    %v32 = vld [vmem:[%s1 + $0x58] sm:$0xff]
    %v33 = vld [vmem:[%s1 + $0x60] sm:$0xff]
    %v34 = vld [vmem:[%s1 + $0x68] sm:$0xff]
    %v35 = vld [vmem:[%s1 + $0x70] sm:$0xff]
    %v36 = vld [vmem:[%s1 + $0x78] sm:$0xff]
    %v37 = vld [vmem:[%s1 + $0x80] sm:$0xff]
    %v38 = vld [vmem:[%s1 + $0x88] sm:$0xff]
    %v39 = vld [vmem:[%s1 + $0x90] sm:$0xff]
    %v40 = vld [vmem:[%s1 + $0x98] sm:$0xff]
    %v41 = vld [vmem:[%s1 + $0xa0] sm:$0xff]
    %v42 = vld [vmem:[%s1 + $0xa8] sm:$0xff]
    %v43 = vld [vmem:[%s1 + $0xb0] sm:$0xff]
    %v44 = vld [vmem:[%s1 + $0xb8] sm:$0xff]
    %v45 = vld [vmem:[%s1 + $0xc0] sm:$0xff]
    %v46 = vld [vmem:[%s1 + $0xc8] sm:$0xff]
    %v47 = vld [vmem:[%s1 + $0xd0] sm:$0xff]
    %v48 = vld [vmem:[%s1 + $0xd8] sm:$0xff]
    %v49 = vld [vmem:[%s1 + $0xe0] sm:$0xff]
    %v50 = vld [vmem:[%s1 + $0xe8] sm:$0xff]
    %v51 = vld [vmem:[%s1 + $0xf0] sm:$0xff]
    %v52 = vld [vmem:[%s1 + $0xf8] sm:$0xff]
    %v53 = vld [vmem:[%s1 + $0x100] sm:$0xff]
    %v54 = vld [vmem:[%s1 + $0x108] sm:$0xff]
    %v55 = vld [vmem:[%s1 + $0x110] sm:$0xff]
    %v56 = vld [vmem:[%s1 + $0x118] sm:$0xff]
    %v57 = vld [vmem:[%s1 + $0x120] sm:$0xff]
    %v58 = vld [vmem:[%s1 + $0x128] sm:$0xff]
    %v59 = vld [vmem:[%s1 + $0x130] sm:$0xff]
    %v60 = vld [vmem:[%s1 + $0x138] sm:$0xff]
    %v61 = vld [vmem:[%s1 + $0x140] sm:$0xff]
    %v62 = vld [vmem:[%s1 + $0x148] sm:$0xff]
    %v63 = vld [vmem:[%s1 + $0x150] sm:$0xff]
    %v64 = vld [vmem:[%s1 + $0x158] sm:$0xff]
    %v65 = vld [vmem:[%s1 + $0x160] sm:$0xff]
    %v66 = vld [vmem:[%s1 + $0x168] sm:$0xff]
    %v67 = vld [vmem:[%s1 + $0x170] sm:$0xff]
    %v68 = vld [vmem:[%s1 + $0x178] sm:$0xff]
    %v69 = vld [vmem:[%s1 + $0x180] sm:$0xff]
    %v70 = vld [vmem:[%s1 + $0x188] sm:$0xff]
    %v71 = vld [vmem:[%s1 + $0x190] sm:$0xff]
    %v72 = vld [vmem:[%s1 + $0x198] sm:$0xff]
    %v73 = vld [vmem:[%s1 + $0x1a0] sm:$0xff]
    %v74 = vld [vmem:[%s1 + $0x1a8] sm:$0xff]
    %v75 = vld [vmem:[%s1 + $0x1b0] sm:$0xff]
    %v76 = vld [vmem:[%s1 + $0x1b8] sm:$0xff]
    %v77 = vld [vmem:[%s1 + $0x1c0] sm:$0x1]
    %v78 = vld [vmem:[%s1 + $0x1c8] sm:$0x1]
    %v79 = vld [vmem:[%s2] sm:$0x3]
    %v80 = vld [vmem:[%s0] sm:$0xf]
    %v82 = vperm.slane %v79, 0
    %v83 = vperm.slane %v79, 1
    %87 = vst [vmem:[#allocation1] ss:$4 sm:$0xff] %v80
    %v88 = vld.sshfl [vmem:[#allocation1] sm:$0xff pattern:$0x73625140]
    %v89 = vld.sshfl [vmem:[#allocation1 + $0x8] sm:$0xff pattern:$0x73625140]
    %vm91 = vcmask 793600
    %v92 = vsel %vm91, %v89, 0
    %vm94 = vcmask 1040384
    %v96 = vsel %vm94, %v77, 0
    %v99 = vsel %vm94, %v78, 0
    %101 = vmatpush.msra.mxu0 %v51
    %102 = vmatpush.msra.mxu0 %v49
    %103 = vmatpush.msra.mxu0 %v47
    %104 = vmatpush.msra.mxu0 %v45
    %105 = vmatpush.msra.mxu0 %v43
    %106 = vmatpush.msra.mxu0 %v41
    %107 = vmatpush.msra.mxu0 %v39
    %108 = vmatpush.msra.mxu0 %v37
    %109 = vmatpush.msra.mxu0 %v35
    %110 = vmatpush.msra.mxu0 %v33
    %111 = vmatpush.msra.mxu0 %v31
    %112 = vmatpush.msra.mxu0 %v29
    %113 = vmatpush.msra.mxu0 %v27
    %114 = vmatpush.msra.mxu0 %v25
    %115 = vmatpush.msra.mxu0 %v23
    %116 = vmatpush.msra.mxu0 %v21
    %117 = vmatmul.f32.gmra.mxu0 %v88
    %v118 = vpop.f32.mrf.mxu0
    %v119 = vadd.f32 %v82, %v118
    %120 = vdwg.mxu0
    %121 = vmatpush.msra.mxu0 0.0
    %122 = vmatpush.msra.mxu0 0.0
    %123 = vmatpush.msra.mxu0 0.0
    %124 = vmatpush.msra.mxu0 %v96
    %125 = vmatpush.msra.mxu0 %v75
    %126 = vmatpush.msra.mxu0 %v73
    %127 = vmatpush.msra.mxu0 %v71
    %128 = vmatpush.msra.mxu0 %v69
    %129 = vmatpush.msra.mxu0 %v67
    %130 = vmatpush.msra.mxu0 %v65
    %131 = vmatpush.msra.mxu0 %v63
    %132 = vmatpush.msra.mxu0 %v61
    %133 = vmatpush.msra.mxu0 %v59
    %134 = vmatpush.msra.mxu0 %v57
    %135 = vmatpush.msra.mxu0 %v55
    %136 = vmatpush.msra.mxu0 %v53
    %137 = vmatmul.f32.gmra.mxu0 %v92
    %v138 = vpop.f32.mrf.mxu0
    %v139 = vadd.f32 %v119, %v138
    %140 = vdwg.mxu0
    %141 = vmatpush.msra.mxu0 %v52
    %142 = vmatpush.msra.mxu0 %v50
    %143 = vmatpush.msra.mxu0 %v48
    %144 = vmatpush.msra.mxu0 %v46
    %145 = vmatpush.msra.mxu0 %v44
    %146 = vmatpush.msra.mxu0 %v42
    %147 = vmatpush.msra.mxu0 %v40
    %148 = vmatpush.msra.mxu0 %v38
    %149 = vmatpush.msra.mxu0 %v36
    %150 = vmatpush.msra.mxu0 %v34
    %151 = vmatpush.msra.mxu0 %v32
    %152 = vmatpush.msra.mxu0 %v30
    %153 = vmatpush.msra.mxu0 %v28
    %154 = vmatpush.msra.mxu0 %v26
    %155 = vmatpush.msra.mxu0 %v24
    %156 = vmatpush.msra.mxu0 %v22
    %157 = vmatmul.f32.gmra.mxu0 %v88
    %v158 = vpop.f32.mrf.mxu0
    %v159 = vadd.f32 %v83, %v158
    %160 = vdwg.mxu0
    %161 = vmatpush.msra.mxu0 0.0
    %162 = vmatpush.msra.mxu0 0.0
    %163 = vmatpush.msra.mxu0 0.0
    %164 = vmatpush.msra.mxu0 %v99
    %165 = vmatpush.msra.mxu0 %v76
    %166 = vmatpush.msra.mxu0 %v74
    %167 = vmatpush.msra.mxu0 %v72
    %168 = vmatpush.msra.mxu0 %v70
    %169 = vmatpush.msra.mxu0 %v68
    %170 = vmatpush.msra.mxu0 %v66
    %171 = vmatpush.msra.mxu0 %v64
    %172 = vmatpush.msra.mxu0 %v62
    %173 = vmatpush.msra.mxu0 %v60
    %174 = vmatpush.msra.mxu0 %v58
    %175 = vmatpush.msra.mxu0 %v56
    %176 = vmatpush.msra.mxu0 %v54
    %177 = vmatmul.f32.gmra.mxu0 %v92
    %v178 = vpop.f32.mrf.mxu0
    %v179 = vadd.f32 %v159, %v178
    %180 = vdwg.mxu0
    %v181 = vmax.f32 %v139, 0.0
    %v182 = vmax.f32 %v179, 0.0
    %s183 = scalar_lea.vmem %s0, 4
    %v184 = vld [vmem:[%s183] sm:$0xf]
    %186 = vst [vmem:[#allocation1] ss:$4 sm:$0xff] %v184
    %v187 = vld.sshfl [vmem:[#allocation1] sm:$0xff pattern:$0x73625140]
    %v188 = vld.sshfl [vmem:[#allocation1 + $0x8] sm:$0xff pattern:$0x73625140]
    %v190 = vsel %vm91, %v188, 0
    %192 = vmatpush.msra.mxu0 %v51
    %193 = vmatpush.msra.mxu0 %v49
    %194 = vmatpush.msra.mxu0 %v47
    %195 = vmatpush.msra.mxu0 %v45
    %196 = vmatpush.msra.mxu0 %v43
    %197 = vmatpush.msra.mxu0 %v41
    %198 = vmatpush.msra.mxu0 %v39
    %199 = vmatpush.msra.mxu0 %v37
    %200 = vmatpush.msra.mxu0 %v35
    %201 = vmatpush.msra.mxu0 %v33
    %202 = vmatpush.msra.mxu0 %v31
    %203 = vmatpush.msra.mxu0 %v29
    %204 = vmatpush.msra.mxu0 %v27
    %205 = vmatpush.msra.mxu0 %v25
    %206 = vmatpush.msra.mxu0 %v23
    %207 = vmatpush.msra.mxu0 %v21
    %208 = vmatmul.f32.gmra.mxu0 %v187
    %v209 = vpop.f32.mrf.mxu0
    %v210 = vadd.f32 %v82, %v209
    %211 = vdwg.mxu0
    %212 = vmatpush.msra.mxu0 0.0
    %213 = vmatpush.msra.mxu0 0.0
    %214 = vmatpush.msra.mxu0 0.0
    %215 = vmatpush.msra.mxu0 %v96
    %216 = vmatpush.msra.mxu0 %v75
    %217 = vmatpush.msra.mxu0 %v73
    %218 = vmatpush.msra.mxu0 %v71
    %219 = vmatpush.msra.mxu0 %v69
    %220 = vmatpush.msra.mxu0 %v67
    %221 = vmatpush.msra.mxu0 %v65
    %222 = vmatpush.msra.mxu0 %v63
    %223 = vmatpush.msra.mxu0 %v61
    %224 = vmatpush.msra.mxu0 %v59
    %225 = vmatpush.msra.mxu0 %v57
    %226 = vmatpush.msra.mxu0 %v55
    %227 = vmatpush.msra.mxu0 %v53
    %228 = vmatmul.f32.gmra.mxu0 %v190
    %v229 = vpop.f32.mrf.mxu0
    %v230 = vadd.f32 %v210, %v229
    %231 = vdwg.mxu0
    %232 = vmatpush.msra.mxu0 %v52
    %233 = vmatpush.msra.mxu0 %v50
    %234 = vmatpush.msra.mxu0 %v48
    %235 = vmatpush.msra.mxu0 %v46
    %236 = vmatpush.msra.mxu0 %v44
    %237 = vmatpush.msra.mxu0 %v42
    %238 = vmatpush.msra.mxu0 %v40
    %239 = vmatpush.msra.mxu0 %v38
    %240 = vmatpush.msra.mxu0 %v36
    %241 = vmatpush.msra.mxu0 %v34
    %242 = vmatpush.msra.mxu0 %v32
    %243 = vmatpush.msra.mxu0 %v30
    %244 = vmatpush.msra.mxu0 %v28
    %245 = vmatpush.msra.mxu0 %v26
    %246 = vmatpush.msra.mxu0 %v24
    %247 = vmatpush.msra.mxu0 %v22
    %248 = vmatmul.f32.gmra.mxu0 %v187
    %v249 = vpop.f32.mrf.mxu0
    %v250 = vadd.f32 %v83, %v249
    %251 = vdwg.mxu0
    %252 = vmatpush.msra.mxu0 0.0
    %253 = vmatpush.msra.mxu0 0.0
    %254 = vmatpush.msra.mxu0 0.0
    %255 = vmatpush.msra.mxu0 %v99
    %256 = vmatpush.msra.mxu0 %v76
    %257 = vmatpush.msra.mxu0 %v74
    %258 = vmatpush.msra.mxu0 %v72
    %259 = vmatpush.msra.mxu0 %v70
    %260 = vmatpush.msra.mxu0 %v68
    %261 = vmatpush.msra.mxu0 %v66
    %262 = vmatpush.msra.mxu0 %v64
    %263 = vmatpush.msra.mxu0 %v62
    %264 = vmatpush.msra.mxu0 %v60
    %265 = vmatpush.msra.mxu0 %v58
    %266 = vmatpush.msra.mxu0 %v56
    %267 = vmatpush.msra.mxu0 %v54
    %268 = vmatmul.f32.gmra.mxu0 %v190
    %v269 = vpop.f32.mrf.mxu0
    %v270 = vadd.f32 %v250, %v269
    %271 = vdwg.mxu0
    %v272 = vmax.f32 %v230, 0.0
    %v273 = vmax.f32 %v270, 0.0
    %v274 = vmax.f32 %v181, %v272
    %v275 = vmax.f32 %v182, %v273
    %s276 = scalar_lea.vmem %s0, 8
    %v277 = vld [vmem:[%s276] sm:$0xf]
    %279 = vst [vmem:[#allocation1] ss:$4 sm:$0xff] %v277
    %v280 = vld.sshfl [vmem:[#allocation1] sm:$0xff pattern:$0x73625140]
    %v281 = vld.sshfl [vmem:[#allocation1 + $0x8] sm:$0xff pattern:$0x73625140]
    %v283 = vsel %vm91, %v281, 0
    %285 = vmatpush.msra.mxu0 %v51
    %286 = vmatpush.msra.mxu0 %v49
    %287 = vmatpush.msra.mxu0 %v47
    %288 = vmatpush.msra.mxu0 %v45
    %289 = vmatpush.msra.mxu0 %v43
    %290 = vmatpush.msra.mxu0 %v41
    %291 = vmatpush.msra.mxu0 %v39
    %292 = vmatpush.msra.mxu0 %v37
    %293 = vmatpush.msra.mxu0 %v35
    %294 = vmatpush.msra.mxu0 %v33
    %295 = vmatpush.msra.mxu0 %v31
    %296 = vmatpush.msra.mxu0 %v29
    %297 = vmatpush.msra.mxu0 %v27
    %298 = vmatpush.msra.mxu0 %v25
    %299 = vmatpush.msra.mxu0 %v23
    %300 = vmatpush.msra.mxu0 %v21
    %301 = vmatmul.f32.gmra.mxu0 %v280
    %v302 = vpop.f32.mrf.mxu0
    %v303 = vadd.f32 %v82, %v302
    %304 = vdwg.mxu0
    %305 = vmatpush.msra.mxu0 0.0
    %306 = vmatpush.msra.mxu0 0.0
    %307 = vmatpush.msra.mxu0 0.0
    %308 = vmatpush.msra.mxu0 %v96
    %309 = vmatpush.msra.mxu0 %v75
    %310 = vmatpush.msra.mxu0 %v73
    %311 = vmatpush.msra.mxu0 %v71
    %312 = vmatpush.msra.mxu0 %v69
    %313 = vmatpush.msra.mxu0 %v67
    %314 = vmatpush.msra.mxu0 %v65
    %315 = vmatpush.msra.mxu0 %v63
    %316 = vmatpush.msra.mxu0 %v61
    %317 = vmatpush.msra.mxu0 %v59
    %318 = vmatpush.msra.mxu0 %v57
    %319 = vmatpush.msra.mxu0 %v55
    %320 = vmatpush.msra.mxu0 %v53
    %321 = vmatmul.f32.gmra.mxu0 %v283
    %v322 = vpop.f32.mrf.mxu0
    %v323 = vadd.f32 %v303, %v322
    %324 = vdwg.mxu0
    %325 = vmatpush.msra.mxu0 %v52
    %326 = vmatpush.msra.mxu0 %v50
    %327 = vmatpush.msra.mxu0 %v48
    %328 = vmatpush.msra.mxu0 %v46
    %329 = vmatpush.msra.mxu0 %v44
    %330 = vmatpush.msra.mxu0 %v42
    %331 = vmatpush.msra.mxu0 %v40
    %332 = vmatpush.msra.mxu0 %v38
    %333 = vmatpush.msra.mxu0 %v36
    %334 = vmatpush.msra.mxu0 %v34
    %335 = vmatpush.msra.mxu0 %v32
    %336 = vmatpush.msra.mxu0 %v30
    %337 = vmatpush.msra.mxu0 %v28
    %338 = vmatpush.msra.mxu0 %v26
    %339 = vmatpush.msra.mxu0 %v24
    %340 = vmatpush.msra.mxu0 %v22
    %341 = vmatmul.f32.gmra.mxu0 %v280
    %v342 = vpop.f32.mrf.mxu0
    %v343 = vadd.f32 %v83, %v342
    %344 = vdwg.mxu0
    %345 = vmatpush.msra.mxu0 0.0
    %346 = vmatpush.msra.mxu0 0.0
    %347 = vmatpush.msra.mxu0 0.0
    %348 = vmatpush.msra.mxu0 %v99
    %349 = vmatpush.msra.mxu0 %v76
    %350 = vmatpush.msra.mxu0 %v74
    %351 = vmatpush.msra.mxu0 %v72
    %352 = vmatpush.msra.mxu0 %v70
    %353 = vmatpush.msra.mxu0 %v68
    %354 = vmatpush.msra.mxu0 %v66
    %355 = vmatpush.msra.mxu0 %v64
    %356 = vmatpush.msra.mxu0 %v62
    %357 = vmatpush.msra.mxu0 %v60
    %358 = vmatpush.msra.mxu0 %v58
    %359 = vmatpush.msra.mxu0 %v56
    %360 = vmatpush.msra.mxu0 %v54
    %361 = vmatmul.f32.gmra.mxu0 %v283
    %v362 = vpop.f32.mrf.mxu0
    %v363 = vadd.f32 %v343, %v362
    %364 = vdwg.mxu0
    %v365 = vmax.f32 %v323, 0.0
    %v366 = vmax.f32 %v363, 0.0
    %v367 = vmax.f32 %v274, %v365
    %v368 = vmax.f32 %v275, %v366
    %s369 = scalar_lea.vmem %s0, 12
    %v370 = vld [vmem:[%s369] sm:$0xf]
    %372 = vst [vmem:[#allocation1] ss:$4 sm:$0xff] %v370
    %v373 = vld.sshfl [vmem:[#allocation1] sm:$0xff pattern:$0x73625140]
    %v374 = vld.sshfl [vmem:[#allocation1 + $0x8] sm:$0xff pattern:$0x73625140]
    %v376 = vsel %vm91, %v374, 0
    %378 = vmatpush.msra.mxu0 %v51
    %379 = vmatpush.msra.mxu0 %v49
    %380 = vmatpush.msra.mxu0 %v47
    %381 = vmatpush.msra.mxu0 %v45
    %382 = vmatpush.msra.mxu0 %v43
    %383 = vmatpush.msra.mxu0 %v41
    %384 = vmatpush.msra.mxu0 %v39
    %385 = vmatpush.msra.mxu0 %v37
    %386 = vmatpush.msra.mxu0 %v35
    %387 = vmatpush.msra.mxu0 %v33
    %388 = vmatpush.msra.mxu0 %v31
    %389 = vmatpush.msra.mxu0 %v29
    %390 = vmatpush.msra.mxu0 %v27
    %391 = vmatpush.msra.mxu0 %v25
    %392 = vmatpush.msra.mxu0 %v23
    %393 = vmatpush.msra.mxu0 %v21
    %394 = vmatmul.f32.gmra.mxu0 %v373
    %v395 = vpop.f32.mrf.mxu0
    %v396 = vadd.f32 %v82, %v395
    %397 = vdwg.mxu0
    %398 = vmatpush.msra.mxu0 0.0
    %399 = vmatpush.msra.mxu0 0.0
    %400 = vmatpush.msra.mxu0 0.0
    %401 = vmatpush.msra.mxu0 %v96
    %402 = vmatpush.msra.mxu0 %v75
    %403 = vmatpush.msra.mxu0 %v73
    %404 = vmatpush.msra.mxu0 %v71
    %405 = vmatpush.msra.mxu0 %v69
    %406 = vmatpush.msra.mxu0 %v67
    %407 = vmatpush.msra.mxu0 %v65
    %408 = vmatpush.msra.mxu0 %v63
    %409 = vmatpush.msra.mxu0 %v61
    %410 = vmatpush.msra.mxu0 %v59
    %411 = vmatpush.msra.mxu0 %v57
    %412 = vmatpush.msra.mxu0 %v55
    %413 = vmatpush.msra.mxu0 %v53
    %414 = vmatmul.f32.gmra.mxu0 %v376
    %v415 = vpop.f32.mrf.mxu0
    %v416 = vadd.f32 %v396, %v415
    %417 = vdwg.mxu0
    %418 = vmatpush.msra.mxu0 %v52
    %419 = vmatpush.msra.mxu0 %v50
    %420 = vmatpush.msra.mxu0 %v48
    %421 = vmatpush.msra.mxu0 %v46
    %422 = vmatpush.msra.mxu0 %v44
    %423 = vmatpush.msra.mxu0 %v42
    %424 = vmatpush.msra.mxu0 %v40
    %425 = vmatpush.msra.mxu0 %v38
    %426 = vmatpush.msra.mxu0 %v36
    %427 = vmatpush.msra.mxu0 %v34
    %428 = vmatpush.msra.mxu0 %v32
    %429 = vmatpush.msra.mxu0 %v30
    %430 = vmatpush.msra.mxu0 %v28
    %431 = vmatpush.msra.mxu0 %v26
    %432 = vmatpush.msra.mxu0 %v24
    %433 = vmatpush.msra.mxu0 %v22
    %434 = vmatmul.f32.gmra.mxu0 %v373
    %v435 = vpop.f32.mrf.mxu0
    %v436 = vadd.f32 %v83, %v435
    %437 = vdwg.mxu0
    %438 = vmatpush.msra.mxu0 0.0
    %439 = vmatpush.msra.mxu0 0.0
    %440 = vmatpush.msra.mxu0 0.0
    %441 = vmatpush.msra.mxu0 %v99
    %442 = vmatpush.msra.mxu0 %v76
    %443 = vmatpush.msra.mxu0 %v74
    %444 = vmatpush.msra.mxu0 %v72
    %445 = vmatpush.msra.mxu0 %v70
    %446 = vmatpush.msra.mxu0 %v68
    %447 = vmatpush.msra.mxu0 %v66
    %448 = vmatpush.msra.mxu0 %v64
    %449 = vmatpush.msra.mxu0 %v62
    %450 = vmatpush.msra.mxu0 %v60
    %451 = vmatpush.msra.mxu0 %v58
    %452 = vmatpush.msra.mxu0 %v56
    %453 = vmatpush.msra.mxu0 %v54
    %454 = vmatmul.f32.gmra.mxu0 %v376
    %v455 = vpop.f32.mrf.mxu0
    %v456 = vadd.f32 %v436, %v455
    %457 = vdwg.mxu0
    %v458 = vmax.f32 %v416, 0.0
    %v459 = vmax.f32 %v456, 0.0
    %v460 = vmax.f32 %v367, %v458
    %v461 = vmax.f32 %v368, %v459
    %v462 = vld [vmem:[%s3] sm:$0xff]
    %v463 = vld [vmem:[%s3 + $0x8] sm:$0xff]
    %v464 = vld [vmem:[%s3 + $0x10] sm:$0xff]
    %v465 = vld [vmem:[%s3 + $0x18] sm:$0xff]
    %v466 = vld [vmem:[%s3 + $0x20] sm:$0xff]
    %v467 = vld [vmem:[%s3 + $0x28] sm:$0xff]
    %v468 = vld [vmem:[%s3 + $0x30] sm:$0xff]
    %v469 = vld [vmem:[%s3 + $0x38] sm:$0xff]
    %v470 = vld [vmem:[%s3 + $0x40] sm:$0xff]
    %v471 = vld [vmem:[%s3 + $0x48] sm:$0xff]
    %v472 = vld [vmem:[%s3 + $0x50] sm:$0xff]
    %v473 = vld [vmem:[%s3 + $0x58] sm:$0xff]
    %v474 = vld [vmem:[%s3 + $0x60] sm:$0xff]
    %v475 = vld [vmem:[%s3 + $0x68] sm:$0xff]
    %v476 = vld [vmem:[%s3 + $0x70] sm:$0xff]
    %v477 = vld [vmem:[%s3 + $0x78] sm:$0xff]
    %v478 = vld [vmem:[%s3 + $0x80] sm:$0xff]
    %v479 = vld [vmem:[%s3 + $0x88] sm:$0xff]
    %v480 = vld [vmem:[%s3 + $0x90] sm:$0xff]
    %v481 = vld [vmem:[%s3 + $0x98] sm:$0xff]
    %v482 = vld [vmem:[%s3 + $0xa0] sm:$0xff]
    %v483 = vld [vmem:[%s3 + $0xa8] sm:$0xff]
    %v484 = vld [vmem:[%s3 + $0xb0] sm:$0xff]
    %v485 = vld [vmem:[%s3 + $0xb8] sm:$0xff]
    %v486 = vld [vmem:[%s3 + $0xc0] sm:$0xff]
    %v487 = vld [vmem:[%s4] sm:$0x1]
    %v489 = vperm.slane %v487, 0
    %vm491 = vcmask 588800
    %v493 = vsel %vm491, %v461, 0
    %495 = vmatpush.msra.mxu0 %v477
    %496 = vmatpush.msra.mxu0 %v476
    %497 = vmatpush.msra.mxu0 %v475
    %498 = vmatpush.msra.mxu0 %v474
    %499 = vmatpush.msra.mxu0 %v473
    %500 = vmatpush.msra.mxu0 %v472
    %501 = vmatpush.msra.mxu0 %v471
    %502 = vmatpush.msra.mxu0 %v470
    %503 = vmatpush.msra.mxu0 %v469
    %504 = vmatpush.msra.mxu0 %v468
    %505 = vmatpush.msra.mxu0 %v467
    %506 = vmatpush.msra.mxu0 %v466
    %507 = vmatpush.msra.mxu0 %v465
    %508 = vmatpush.msra.mxu0 %v464
    %509 = vmatpush.msra.mxu0 %v463
    %510 = vmatpush.msra.mxu0 %v462
    %511 = vmatmul.f32.gmra.mxu0 %v460
    %v512 = vpop.f32.mrf.mxu0
    %v513 = vadd.f32 %v489, %v512
    %514 = vdwg.mxu0
    %515 = vmatpush.msra.mxu0 0.0
    %516 = vmatpush.msra.mxu0 0.0
    %517 = vmatpush.msra.mxu0 0.0
    %518 = vmatpush.msra.mxu0 0.0
    %519 = vmatpush.msra.mxu0 0.0
    %520 = vmatpush.msra.mxu0 0.0
    %521 = vmatpush.msra.mxu0 0.0
    %522 = vmatpush.msra.mxu0 %v486
    %523 = vmatpush.msra.mxu0 %v485
    %524 = vmatpush.msra.mxu0 %v484
    %525 = vmatpush.msra.mxu0 %v483
    %526 = vmatpush.msra.mxu0 %v482
    %527 = vmatpush.msra.mxu0 %v481
    %528 = vmatpush.msra.mxu0 %v480
    %529 = vmatpush.msra.mxu0 %v479
    %530 = vmatpush.msra.mxu0 %v478
    %531 = vmatmul.f32.gmra.mxu0 %v493
    %v532 = vpop.f32.mrf.mxu0
    %v533 = vadd.f32 %v513, %v532
    %534 = vdwg.mxu0
    %vm535 = vcmask 287744
    %536 = vst.msk [vmem:[#allocation2] sm:$0x3] %vm535, %v533
    // Predicated region
    $region22: #{captcha_cnn_forward.1} parent=1 // pred_check
      _
    $region23: #{captcha_cnn_forward.1} parent=1 // pred_check_branch
      %538 = sbr.rel (0) target = $region25
    $region24: #{captcha_cnn_forward.1} parent=1 // pred_region
      %540 = vsyncadd [#allocation3], 0
      %s542 = sshll.u32 [#allocation2], 4
      %s543 = int_to_ptr.vmem [resolvable:$true] %s542
      %s544 = sshll.u32 %s5, 4
      %s545 = int_to_ptr.hbm [resolvable:$true] %s544
      %547 = dma.vmem_to_hbm [thread:$0]  %s543, 32, %s545, [#allocation3]
    $region25: #{captcha_cnn_forward.1} parent=1 // pred_fallthru
      _
    // Predicated region
    $region26: #{captcha_cnn_forward.1} parent=1 // pred_check
      _
    $region27: #{captcha_cnn_forward.1} parent=1 // pred_check_branch
      %549 = sbr.rel (0) target = $region29
    $region28: #{captcha_cnn_forward.1} parent=1 // pred_region
      %551 = dma.done [#allocation3], 32
    $region29: #{captcha_cnn_forward.1} parent=1 // pred_fallthru
      _
    %552 = vsyncpa [#allocation3], 1

</llo_original>
